<compile_context>
chip_gen: v6e
topology: v6e:2x2x1
jax: 0.10.0
libtpu: 0.0.40
codegen_flags: <defaults>
</compile_context>

<pallas_src>
import functools

import jax
import jax.numpy as jnp
from jax.experimental import pallas as pl
from jax.experimental.pallas import tpu as pltpu


def _vmem_capacity_bytes():
    try:
        return int(pltpu.get_tpu_info().vmem_capacity_bytes)
    except Exception:
        return 64 << 20  # conservative fallback: assume v7x-sized VMEM per core


# ---------------------------------------------------------------------------
# Fused path: pool + excitation + scale in one kernel (grid over batch chunks).
# ---------------------------------------------------------------------------
def _se_kernel(x_ref, w1_ref, w2_ref, o_ref, *, inv_hw):
    # x_ref / o_ref: (bt, C, HW)   w1_ref: (Cr, C)   w2_ref: (C, Cr)
    # Squeeze: global average pool; f32 accumulation fused into the reduce
    # (no materialized f32 copy of the big tile).
    pool = jnp.sum(x_ref[...], axis=-1, dtype=jnp.float32) * inv_hw        # (bt, C)

    # Excitation: fc1 -> ReLU -> fc2 -> sigmoid, batched over bt rows.
    # Feed the MXU operands in the weights' native dtype, accumulate in f32.
    w1 = w1_ref[...]
    lhs1 = pool if w1.dtype == jnp.float32 else pool.astype(w1.dtype)
    h = jax.lax.dot_general(lhs1, w1,
                            dimension_numbers=(((1,), (1,)), ((), ())),
                            preferred_element_type=jnp.float32)            # (bt, Cr)
    h = jnp.maximum(h, 0.0)
    w2 = w2_ref[...]
    lhs2 = h if w2.dtype == jnp.float32 else h.astype(w2.dtype)
    y = jax.lax.dot_general(lhs2, w2,
                            dimension_numbers=(((1,), (1,)), ((), ())),
                            preferred_element_type=jnp.float32)            # (bt, C)
    y = jax.nn.sigmoid(y).astype(o_ref.dtype)

    # Scale: re-read x from VMEM at the multiply-store so the big tile is not
    # held live across the serial excitation section.
    o_ref[...] = x_ref[...] * y[:, :, None]


# ---------------------------------------------------------------------------
# Fallback path: XLA gate + streaming Pallas scale (for slabs > VMEM budget).
# ---------------------------------------------------------------------------
def _scale_kernel(x_ref, y_ref, o_ref):
    # x_ref / o_ref: (1, C, st)   y_ref: (1, C, 1)
    o_ref[...] = x_ref[...] * y_ref[...]


def _se_layer_two_pass(x_flat, w1, w2, vmem_ceiling):
    """Two-pass fallback: gate via plain XLA, x*y scale streamed through Pallas."""
    B, C, HW = x_flat.shape
    # Gate (tiny compute): mean pool -> fc1 -> ReLU -> fc2 -> sigmoid, in f32.
    pool = jnp.mean(x_flat.astype(jnp.float32), axis=-1)                    # (B, C)
    h = jnp.maximum(pool @ w1.astype(jnp.float32).T, 0.0)                   # (B, Cr)
    y = jax.nn.sigmoid(h @ w2.astype(jnp.float32).T).astype(x_flat.dtype)   # (B, C)
    y = y.reshape(B, C, 1)

    itemsize = x_flat.dtype.itemsize
    budget = min(vmem_ceiling - (4 << 20), 32 << 20)
    st = max(128, (budget // (4 * C * itemsize)) // 128 * 128)  # lane-dense chunk
    st = min(st, HW)
    num_spatial = pl.cdiv(HW, st)
    needed = 4 * C * st * itemsize + 4 * C * itemsize
    vmem_limit = int(min(vmem_ceiling, needed + (4 << 20)))

    out_flat = pl.pallas_call(
        _scale_kernel,
        out_shape=jax.ShapeDtypeStruct((B, C, HW), x_flat.dtype),
        grid_spec=pltpu.PrefetchScalarGridSpec(
            num_scalar_prefetch=0,
            grid=(B, num_spatial),
            in_specs=[
                pl.BlockSpec((1, C, st), lambda b, s: (b, 0, s)),
                pl.BlockSpec((1, C, 1), lambda b, s: (b, 0, 0)),
            ],
            out_specs=pl.BlockSpec((1, C, st), lambda b, s: (b, 0, s)),
        ),
        input_output_aliases={0: 0},
        compiler_params=pltpu.CompilerParams(
            dimension_semantics=("parallel", "parallel"),
            vmem_limit_bytes=vmem_limit,
        ),
    )(x_flat, y)
    return out_flat


# ---------------------------------------------------------------------------
# Public wrapper.
# ---------------------------------------------------------------------------
def se_layer(x, w1, w2, *, vmem_tile_budget_bytes=None):
    """SELayer forward.  x: (B, C, H, W); w1: (C//r, C); w2: (C, C//r)."""
    B, C, H, W = x.shape
    Cr = w1.shape[0]
    HW = H * W
    x_flat = x.reshape(B, C, HW)

    itemsize = x.dtype.itemsize
    w_itemsize = w1.dtype.itemsize

    vmem_cap = _vmem_capacity_bytes()
    # Leave ~25% of physical VMEM for Mosaic internal scratch / semaphores.
    vmem_ceiling = (vmem_cap * 3) // 4
    if vmem_tile_budget_bytes is None:
        # Generation-aware default: smaller tiles on v7x (64 MiB VMEM per TC),
        # larger tiles on v5e/v6e (128 MiB physical VMEM).
        vmem_tile_budget_bytes = (22 << 20) if vmem_cap <= (64 << 20) else (80 << 20)

    per_batch_bytes = 4 * C * HW * itemsize      # input + output tile, double-buffered
    weight_bytes = 4 * Cr * C * w_itemsize       # w1 + w2, double-buffered
    headroom = 2 << 20
    budget = min(vmem_tile_budget_bytes, vmem_ceiling - weight_bytes - headroom)

    if per_batch_bytes > budget:
        # Even a single (1, C, HW) slab does not fit the budget: run the
        # functional two-pass fallback (one extra HBM read of x, but it runs).
        return _se_layer_two_pass(x_flat, w1, w2, vmem_ceiling).reshape(B, C, H, W)

    bt = max(1, min(B, budget // per_batch_bytes))
    if B > 1:
        # Aim for >= min(B, 4) grid steps: pipelines DMA/compute/writeback and
        # feeds both v7x TensorCores; never a single monolithic block.
        min_blocks = min(B, 4)
        while bt > 1 and pl.cdiv(B, bt) < min_blocks:
            bt -= 1
        # Prefer an even block count so neither v7x core idles on a tail block.
        bt_even = bt
        while bt_even > 1 and pl.cdiv(B, bt_even) % 2 == 1:
            bt_even -= 1
        if pl.cdiv(B, bt_even) % 2 == 0:
            bt = bt_even
    num_blocks = pl.cdiv(B, bt)
    # NOTE: B == 1 with a fitting slab runs as a single step on one TensorCore;
    # the two-pass fallback above covers the case where it does not fit.

    needed = bt * per_batch_bytes + weight_bytes
    # By construction needed + headroom <= vmem_ceiling, so the limit can never
    # clamp below the actual tile footprint (the old formula could).
    vmem_limit = int(min(vmem_ceiling, needed + headroom))

    kernel = functools.partial(_se_kernel, inv_hw=1.0 / float(HW))

    out_flat = pl.pallas_call(
        kernel,
        out_shape=jax.ShapeDtypeStruct((B, C, HW), x.dtype),
        grid_spec=pltpu.PrefetchScalarGridSpec(
            num_scalar_prefetch=0,
            grid=(num_blocks,),
            in_specs=[
                pl.BlockSpec((bt, C, HW), lambda i: (i, 0, 0)),
                pl.BlockSpec((Cr, C), lambda i: (0, 0)),
                pl.BlockSpec((C, Cr), lambda i: (0, 0)),
            ],
            out_specs=pl.BlockSpec((bt, C, HW), lambda i: (i, 0, 0)),
        ),
        # Output aliases x (shapes/dtypes match exactly): saves a full HBM
        # allocation and lets callers donate the activation buffer.
        input_output_aliases={0: 0},
        compiler_params=pltpu.CompilerParams(
            dimension_semantics=("parallel",),
            vmem_limit_bytes=vmem_limit,
        ),
        # Possible further tweak: pipeline_mode=pl.Buffered(3) on the x spec
        # when num_blocks >= 4 and per-step tiles are small (sweep 2 vs 3).
    )(x_flat, w1, w2)

    return out_flat.reshape(B, C, H, W)


# ---------------------------------------------------------------------------
# Pure-JAX reference + checks.
# ---------------------------------------------------------------------------
def se_layer_ref(x, w1, w2):
    pool = jnp.mean(x, axis=(2, 3))                      # (B, C)
    h = jnp.maximum(pool @ w1.T, 0.0)                    # (B, C//r)
    y = jax.nn.sigmoid(h @ w2.T)                         # (B, C)
    return x * y[:, :, None, None]


def _check(B, C, H, W, reduction, key, **se_kwargs):
    Cr = C // reduction
    kx, k1, k2 = jax.random.split(key, 3)
    x = jax.random.normal(kx, (B, C, H, W), dtype=jnp.float32)
    # PyTorch Linear layout: (out_features, in_features).
    w1 = jax.random.normal(k1, (Cr, C), dtype=jnp.float32) * 0.1
    w2 = jax.random.normal(k2, (C, Cr), dtype=jnp.float32) * 0.1

    fn = jax.jit(functools.partial(se_layer, **se_kwargs))
    out = jax.block_until_ready(fn(x, w1, w2))
    ref = se_layer_ref(x, w1, w2)
    assert out.shape == ref.shape, (out.shape, ref.shape)
    assert jnp.allclose(out, ref, atol=1e-5, rtol=1e-5), (B, C, H, W)


if __name__ == "__main__":
    key = jax.random.PRNGKey(0)
    k0, k1, k2, k3 = jax.random.split(key, 4)

    # Lane-dense spatial (HW = 256): fused path, bt = 1, 2 grid steps.
    _check(B=2, C=32, H=16, W=16, reduction=16, key=k0)
    # Non-128-multiple spatial (HW = 144): no wrapper pad, masked tail vregs.
    _check(B=2, C=32, H=12, W=12, reduction=16, key=k1)
    # Non-divisible batch: bt = 2 -> 5 blocks with a partial last batch block.
    _check(B=9, C=32, H=16, W=16, reduction=16, key=k2)
    # Tiny budget forces the two-pass (XLA gate + streaming Pallas scale) path.
    _check(B=2, C=32, H=16, W=16, reduction=16, key=k3,
           vmem_tile_budget_bytes=64 * 1024)

    print("KERNEL_OK")
</pallas_src>

<mosaic_0001>
module attributes {stable_mosaic.version = 11 : i64} {
  func.func @_se_kernel(%arg0: i32, %arg1: memref<1x32x256xf32, #tpu.memory_space<vmem>>, %arg2: memref<2x32xf32, #tpu.memory_space<vmem>>, %arg3: memref<32x2xf32, #tpu.memory_space<vmem>>, %arg4: memref<1x32x256xf32, #tpu.memory_space<vmem>>) attributes {dimension_semantics = [#tpu.dimension_semantics<parallel>], iteration_bounds = array<i64: 2>, scalar_prefetch = 0 : i64, scratch_operands = 0 : i64, tpu.core_type = #tpu.core_type<tc>, window_params = [{transform_indices = @transform_0, window_bounds = array<i64: 1, 32, 256>}, {pipeline_mode = #tpu.pipeline_mode<synchronous>, transform_indices = @transform_1, window_bounds = array<i64: 2, 32>}, {pipeline_mode = #tpu.pipeline_mode<synchronous>, transform_indices = @transform_2, window_bounds = array<i64: 32, 2>}, {transform_indices = @transform_3, window_bounds = array<i64: 1, 32, 256>}]} {
    %c0 = arith.constant 0 : index
    %c0_0 = arith.constant 0 : index
    %c0_1 = arith.constant 0 : index
    %0 = vector.load %arg1[%c0, %c0_0, %c0_1] : memref<1x32x256xf32, #tpu.memory_space<vmem>>, vector<1x32x256xf32>
    %cst = arith.constant dense<0.000000e+00> : vector<1x32xf32>
    %1 = vector.multi_reduction <add>, %0, %cst [2] : vector<1x32x256xf32> to vector<1x32xf32>
    %cst_2 = arith.constant 3.906250e-03 : f32
    %2 = vector.broadcast %cst_2 : f32 to vector<1x32xf32>
    %3 = arith.mulf %1, %2 : vector<1x32xf32>
    %c0_3 = arith.constant 0 : index
    %c0_4 = arith.constant 0 : index
    %4 = vector.load %arg2[%c0_3, %c0_4] : memref<2x32xf32, #tpu.memory_space<vmem>>, vector<2x32xf32>
    %cst_5 = arith.constant dense<0.000000e+00> : vector<1x2xf32>
    %5 = tpu.matmul %3, %4, %cst_5 {dimension_numbers = #tpu.dot_dimension_numbers<[1], [1], [0], [0], [0, 0, 1, 0], [], []>} : vector<1x32xf32>, vector<2x32xf32>, vector<1x2xf32> -> vector<1x2xf32>
    %cst_6 = arith.constant 0.000000e+00 : f32
    %6 = vector.broadcast %cst_6 : f32 to vector<1x2xf32>
    %7 = arith.maximumf %5, %6 : vector<1x2xf32>
    %c0_7 = arith.constant 0 : index
    %c0_8 = arith.constant 0 : index
    %8 = vector.load %arg3[%c0_7, %c0_8] : memref<32x2xf32, #tpu.memory_space<vmem>>, vector<32x2xf32>
    %cst_9 = arith.constant dense<0.000000e+00> : vector<1x32xf32>
    %9 = tpu.matmul %7, %8, %cst_9 {dimension_numbers = #tpu.dot_dimension_numbers<[1], [1], [0], [0], [0, 0, 1, 0], [], []>} : vector<1x2xf32>, vector<32x2xf32>, vector<1x32xf32> -> vector<1x32xf32>
    %10 = arith.negf %9 : vector<1x32xf32>
    %11 = math.exp %10 : vector<1x32xf32>
    %cst_10 = arith.constant 1.000000e+00 : f32
    %12 = vector.broadcast %cst_10 : f32 to vector<1x32xf32>
    %13 = arith.addf %12, %11 : vector<1x32xf32>
    %14 = arith.divf %12, %13 : vector<1x32xf32>
    %c0_11 = arith.constant 0 : index
    %c0_12 = arith.constant 0 : index
    %c0_13 = arith.constant 0 : index
    %15 = vector.load %arg1[%c0_11, %c0_12, %c0_13] : memref<1x32x256xf32, #tpu.memory_space<vmem>>, vector<1x32x256xf32>
    %16 = vector.shape_cast %14 : vector<1x32xf32> to vector<1x32x1xf32>
    %17 = vector.broadcast %16 : vector<1x32x1xf32> to vector<1x32x256xf32>
    %18 = arith.mulf %15, %17 : vector<1x32x256xf32>
    %c0_14 = arith.constant 0 : index
    %c0_15 = arith.constant 0 : index
    %c0_16 = arith.constant 0 : index
    %19 = vector.load %arg4[%c0_14, %c0_15, %c0_16] : memref<1x32x256xf32, #tpu.memory_space<vmem>>, vector<1x32x256xf32>
    tpu.vector_store %arg4[%c0_14, %c0_15, %c0_16], %18 {strides = array<i32>} : memref<1x32x256xf32, #tpu.memory_space<vmem>>, vector<1x32x256xf32>,
    return
  }
  func.func @transform_0(%arg0: i32) -> (i32, i32, i32) {
    %c0_i32 = arith.constant 0 : i32
    %c0_i32_0 = arith.constant 0 : i32
    %c0_i32_1 = arith.constant 0 : i32
    return %arg0, %c0_i32, %c0_i32_0 : i32, i32, i32
  }
  func.func @transform_1(%arg0: i32) -> (i32, i32) {
    %c0_i32 = arith.constant 0 : i32
    %c0_i32_0 = arith.constant 0 : i32
    %c0_i32_1 = arith.constant 0 : i32
    return %c0_i32, %c0_i32_0 : i32, i32
  }
  func.func @transform_2(%arg0: i32) -> (i32, i32) {
    %c0_i32 = arith.constant 0 : i32
    %c0_i32_0 = arith.constant 0 : i32
    %c0_i32_1 = arith.constant 0 : i32
    return %c0_i32, %c0_i32_0 : i32, i32
  }
  func.func @transform_3(%arg0: i32) -> (i32, i32, i32) {
    %c0_i32 = arith.constant 0 : i32
    %c0_i32_0 = arith.constant 0 : i32
    %c0_i32_1 = arith.constant 0 : i32
    return %arg0, %c0_i32, %c0_i32_0 : i32, i32, i32
  }
}

</mosaic_0001>

<llo_original>
// kernel: se_layer.1
$region0: #{se_layer.1}
  #allocation0 [shape = 'u32[]', space=smem, size = 0x4, offset = 0x4, fixed_abs, tag = 'smem constant byte address 0x4 - core index']
  #allocation1 [shape = 'u32[144,128]{1,0:T(1,128)}', space=vmem, size = 0x12000, scoped, tag = 'internal scratch']
  %s0 = inlined_call_operand.vmem [shape: f32[2,32,256], index: 0, kind: input, shape index: {}, may-alias: {0,3}]
  %s1 = inlined_call_operand.vmem [shape: f32[2,32], index: 1, kind: input, shape index: {}]
  %s2 = inlined_call_operand.vmem [shape: f32[32,2], index: 2, kind: input, shape index: {}]
  %s3 = inlined_call_operand.vmem [shape: f32[2,32,256], index: 3, kind: output, shape index: {}, may-alias: {0,3}]
  %s4 = sld [smem:[#allocation0]]
  $region45: #{se_layer.1} parent=0
    _
  %s6 = ssub.s32 1, %s4
  %s7 = scalar_select 0, %s6, %s4
  loop: start=0, step=1, limit=4
  $region2: #{se_layer.1} parent=0 // loop_pre_header
    _
  $region3: #{se_layer.1} parent=0 // loop_header
    %s9 = sphi 0, %s13
    %p10 = scmp.ge.s32.totalorder %s9, 4
    %s19 = sphi 0, %s21
    %s22 = sphi 0, %s19
    %s23 = sphi 0, %s22
    %s39 = sphi 0, %s23
    %s43 = sphi 0, %s43
    %s45 = sphi 0, %s43
    %s46 = sphi 0, %s45
    %s60 = sphi 0, %s46
    %s64 = sphi 0, %s64
    %s66 = sphi 0, %s64
    %s67 = sphi 0, %s66
    %s81 = sphi 0, %s67
    %s87 = sphi 0, %s89
    %s90 = sphi 0, %s87
    %s91 = sphi 0, %s90
    %s107 = sphi 0, %s91
  $region4: #{se_layer.1} parent=0 // loop_header_branch
    %12 = sbr.rel (%p10) target = $region8
  $region5: #{se_layer.1} parent=0 // loop_body
    %s14 = ssub.s32 %s9, 1
    %s15 = ssub.s32 %s9, 2
    %s16 = sadd.s32 %s9, 1
    %s17 = ssub.s32 %s9, %s16
    %p18 = scmp.eq.s32.totalorder %s17, 0
    %s20 = sadd.s32 %s19, 1
    %s21 = scalar_select %p18, %s19, %s20
    %p24 = pneg %p18
    %p25 = scmp.eq.s32.totalorder %s9, 1
    %p26 = por %p24, %p25
    %p27 = scmp.ne.s32.totalorder %s19, %s22
    %p28 = scmp.eq.s32.totalorder %s9, 0
    %p29 = por %p27, %p28
    %p30 = scmp.ne.s32.totalorder %s19, %s22
    %p31 = scmp.eq.s32.totalorder %s14, 1
    %p32 = por %p30, %p31
    %p33 = scmp.ne.s32.totalorder %s22, %s23
    %p34 = scmp.eq.s32.totalorder %s14, 0
    %p35 = por %p33, %p34
    %p36 = scmp.ne.s32.totalorder %s22, %s23
    %p37 = scmp.eq.s32.totalorder %s15, 1
    %p38 = por %p36, %p37
    %p40 = scmp.ne.s32.totalorder %s23, %s39
    %p41 = scmp.eq.s32.totalorder %s15, 0
    %p42 = por %p40, %p41
    %s44 = sadd.s32 %s43, 1
    %p47 = scmp.eq.s32.totalorder %s9, 1
    %p48 = scmp.ne.s32.totalorder %s43, %s45
    %p49 = scmp.eq.s32.totalorder %s9, 0
    %p50 = por %p48, %p49
    %p51 = scmp.ne.s32.totalorder %s43, %s45
    %p52 = scmp.eq.s32.totalorder %s14, 1
    %p53 = por %p51, %p52
    %p54 = scmp.ne.s32.totalorder %s45, %s46
    %p55 = scmp.eq.s32.totalorder %s14, 0
    %p56 = por %p54, %p55
    %p57 = scmp.ne.s32.totalorder %s45, %s46
    %p58 = scmp.eq.s32.totalorder %s15, 1
    %p59 = por %p57, %p58
    %p61 = scmp.ne.s32.totalorder %s46, %s60
    %p62 = scmp.eq.s32.totalorder %s15, 0
    %p63 = por %p61, %p62
    %s65 = sadd.s32 %s64, 1
    %p68 = scmp.eq.s32.totalorder %s9, 1
    %p69 = scmp.ne.s32.totalorder %s64, %s66
    %p70 = scmp.eq.s32.totalorder %s9, 0
    %p71 = por %p69, %p70
    %p72 = scmp.ne.s32.totalorder %s64, %s66
    %p73 = scmp.eq.s32.totalorder %s14, 1
    %p74 = por %p72, %p73
    %p75 = scmp.ne.s32.totalorder %s66, %s67
    %p76 = scmp.eq.s32.totalorder %s14, 0
    %p77 = por %p75, %p76
    %p78 = scmp.ne.s32.totalorder %s66, %s67
    %p79 = scmp.eq.s32.totalorder %s15, 1
    %p80 = por %p78, %p79
    %p82 = scmp.ne.s32.totalorder %s67, %s81
    %p83 = scmp.eq.s32.totalorder %s15, 0
    %p84 = por %p82, %p83
    %s85 = ssub.s32 %s9, %s16
    %p86 = scmp.eq.s32.totalorder %s85, 0
    %s88 = sadd.s32 %s87, 1
    %s89 = scalar_select %p86, %s87, %s88
    %p92 = pneg %p86
    %p93 = scmp.eq.s32.totalorder %s9, 1
    %p94 = por %p92, %p93
    %p95 = scmp.ne.s32.totalorder %s87, %s90
    %p96 = scmp.eq.s32.totalorder %s9, 0
    %p97 = por %p95, %p96
    %p98 = scmp.ne.s32.totalorder %s87, %s90
    %p99 = scmp.eq.s32.totalorder %s14, 1
    %p100 = por %p98, %p99
    %p101 = scmp.ne.s32.totalorder %s90, %s91
    %p102 = scmp.eq.s32.totalorder %s14, 0
    %p103 = por %p101, %p102
    %p104 = scmp.ne.s32.totalorder %s90, %s91
    %p105 = scmp.eq.s32.totalorder %s15, 1
    %p106 = por %p104, %p105
    %p108 = scmp.ne.s32.totalorder %s91, %s107
    %p109 = scmp.eq.s32.totalorder %s15, 0
    %p110 = por %p108, %p109
    %p111 = scmp.le.s32.totalorder 1, %s9
    %p112 = scmp.lt.s32.totalorder %s9, 3
    %p113 = pnand %p111, %p112
    %p114 = pneg %p113
    // Predicated region
    $region9: #{se_layer.1} parent=5 // pred_check
      _
    $region10: #{se_layer.1} parent=5 // pred_check_branch
      %116 = sbr.rel (%p113) target = $region12
    $region11: #{se_layer.1} parent=5 // pred_region
      %s117 = ssub.s32 %s9, 1
      // Predicated region
      $region13: #{se_layer.1} parent=11 // pred_check
        %p118 = pneg %p56
      $region14: #{se_layer.1} parent=11 // pred_check_branch
        %120 = sbr.rel (%p118) target = $region16
      $region15: #{se_layer.1} parent=11 // pred_region
        _
      $region16: #{se_layer.1} parent=11 // pred_fallthru
        _
      // Predicated region
      $region17: #{se_layer.1} parent=11 // pred_check
        %p121 = pneg %p77
      $region18: #{se_layer.1} parent=11 // pred_check_branch
        %123 = sbr.rel (%p121) target = $region20
      $region19: #{se_layer.1} parent=11 // pred_region
        _
      $region20: #{se_layer.1} parent=11 // pred_fallthru
        _
    $region12: #{se_layer.1} parent=5 // pred_fallthru
      _
    %p124 = scmp.lt.s32.totalorder %s9, 2
    // Predicated region
    $region21: #{se_layer.1} parent=5 // pred_check
      %p125 = pneg %p124
    $region22: #{se_layer.1} parent=5 // pred_check_branch
      %127 = sbr.rel (%p125) target = $region24
    $region23: #{se_layer.1} parent=5 // pred_region
      // Predicated region
      $region25: #{se_layer.1} parent=23 // pred_check
        %p128 = pneg %p29
      $region26: #{se_layer.1} parent=23 // pred_check_branch
        %130 = sbr.rel (%p128) target = $region28
      $region27: #{se_layer.1} parent=23 // pred_region
        %p131 = scmp.lt.s32.totalorder %s9, 1
        %s132 = scalar_select %p131, %s9, 1
        %s133 = smul.addr %s132, 8
        %s134 = smul.addr %s133, 8
        %s135 = scalar_lea.vmem %s0, %s134
      $region28: #{se_layer.1} parent=23 // pred_fallthru
        _
    $region24: #{se_layer.1} parent=5 // pred_fallthru
      _
    %p136 = scmp.le.s32.totalorder 1, %s9
    %p137 = scmp.lt.s32.totalorder %s9, 3
    %p138 = pnand %p136, %p137
    %p139 = pneg %p138
    // Predicated region
    $region29: #{se_layer.1} parent=5 // pred_check
      _
    $region30: #{se_layer.1} parent=5 // pred_check_branch
      %141 = sbr.rel (%p138) target = $region32
    $region31: #{se_layer.1} parent=5 // pred_region
      %s142 = ssub.s32 %s9, 1
      %p143 = scmp.lt.s32.totalorder %s14, 1
      %s144 = scalar_select %p143, %s14, 1
      %s145 = smul.addr %s144, 8
      %s146 = smul.addr %s145, 8
      %s147 = scalar_lea.vmem %s0, %s146
      %p148 = pneg %p35
      %p149 = pneg %p32
      %p150 = pneg %p56
      %p151 = pneg %p53
      %p152 = pneg %p77
      %p153 = pneg %p74
      %p154 = pneg %p103
      %p155 = pneg %p100
      %p156 = scmp.lt.s32.totalorder %s14, 1
      %s157 = scalar_select %p156, %s14, 1
      %s158 = smul.addr %s157, 8
      %s159 = smul.addr %s158, 8
      %s160 = scalar_lea.vmem %s3, %s159
      %p161 = scmp.lt.s32.totalorder %s14, 1
      %s162 = scalar_select %p161, %s14, 1
      %s163 = smul.addr %s162, 8
      %s164 = smul.addr %s163, 8
      %s165 = scalar_lea.vmem %s0, %s164
      %p166 = scmp.lt.s32.totalorder %s14, 1
      %s167 = scalar_select %p166, %s14, 1
      %s168 = smul.addr %s167, 8
      %s169 = smul.addr %s168, 8
      %s170 = scalar_lea.vmem %s3, %s169
      %v171 = vld [vmem:[%s165] sm:$0xff]
      %v172 = vld [vmem:[%s165 + $0x8] sm:$0xff]
      %v173 = vld [vmem:[%s165 + $0x10] sm:$0xff]
      %v174 = vld [vmem:[%s165 + $0x18] sm:$0xff]
      %v175 = vld [vmem:[%s165 + $0x20] sm:$0xff]
      %v176 = vld [vmem:[%s165 + $0x28] sm:$0xff]
      %v177 = vld [vmem:[%s165 + $0x30] sm:$0xff]
      %v178 = vld [vmem:[%s165 + $0x38] sm:$0xff]
      %v179 = vadd.f32 %v171, %v172
      %180 = vadd.xlane.f32.xlu0 %v179
      %v181 = vpop.xlane.xlu0 %180
      %v182 = vadd.f32 %v173, %v174
      %183 = vadd.xlane.f32.xlu0 %v182
      %v184 = vpop.xlane.xlu0 %183
      %v185 = vadd.f32 %v175, %v176
      %186 = vadd.xlane.f32.xlu0 %v185
      %v187 = vpop.xlane.xlu0 %186
      %v188 = vadd.f32 %v177, %v178
      %189 = vadd.xlane.f32.xlu0 %v188
      %v190 = vpop.xlane.xlu0 %189
      %v191 = vmul.f32 %v181, 0.00390625
      %v192 = vmul.f32 %v184, 0.00390625
      %v193 = vmul.f32 %v187, 0.00390625
      %v194 = vmul.f32 %v190, 0.00390625
      %v195 = vld [vmem:[%s1] sm:$0x3]
      %v200 = vlaneseq
      %v201 = vand.u32 %v200, 127
      %v202 = vlaneseq
      %v203 = vshrl.u32 %v202, 7
      %v204 = vsub.s32 %v201, %v203
      %v205 = vrot.slane %v191, %v204
      %v206 = vadd.s32 %v201, 4294967288
      %v207 = vlaneseq
      %v208 = vshrl.u32 %v207, 7
      %v209 = vsub.s32 %v206, %v208
      %v210 = vrot.slane %v192, %v209
      %vm211 = vcmask 130112
      %v212 = vsel %vm211, %v210, %v205
      %v213 = vadd.s32 %v201, 4294967280
      %v214 = vlaneseq
      %v215 = vshrl.u32 %v214, 7
      %v216 = vsub.s32 %v213, %v215
      %v217 = vrot.slane %v193, %v216
      %vm218 = vcmask 195712
      %v219 = vsel %vm218, %v217, %v212
      %v220 = vadd.s32 %v201, 4294967272
      %v221 = vlaneseq
      %v222 = vshrl.u32 %v221, 7
      %v223 = vsub.s32 %v220, %v222
      %v224 = vrot.slane %v194, %v223
      %vm225 = vcmask 261312
      %v226 = vsel %vm225, %v224, %v219
      %vm227 = vcmask 261120
      %v228 = vsel %vm227, %v226, 0
      %v231 = vsel %vm227, %v195, 0
      %233 = vmatprep.subr.mxu0 0.0
      %234 = vmatpush1.xpose.msra.mxu0 0.0
      %235 = vmatprep.subr.mxu0 0.0
      %236 = vmatpush1.xpose.msra.mxu0 0.0
      %237 = vmatprep.subr.mxu0 0.0
      %238 = vmatpush1.xpose.msra.mxu0 0.0
      %239 = vmatprep.subr.mxu0 0.0
      %240 = vmatpush1.xpose.msra.mxu0 0.0
      %241 = vmatprep.subr.mxu0 0.0
      %242 = vmatpush1.xpose.msra.mxu0 0.0
      %243 = vmatprep.subr.mxu0 0.0
      %244 = vmatpush1.xpose.msra.mxu0 0.0
      %245 = vmatprep.subr.mxu0 0.0
      %246 = vmatpush1.xpose.msra.mxu0 0.0
      %247 = vmatprep.subr.mxu0 0.0
      %248 = vmatpush1.xpose.msra.mxu0 0.0
      %249 = vmatprep.subr.mxu0 0.0
      %250 = vmatpush1.xpose.msra.mxu0 0.0
      %251 = vmatprep.subr.mxu0 0.0
      %252 = vmatpush1.xpose.msra.mxu0 0.0
      %253 = vmatprep.subr.mxu0 0.0
      %254 = vmatpush1.xpose.msra.mxu0 0.0
      %255 = vmatprep.subr.mxu0 0.0
      %256 = vmatpush1.xpose.msra.mxu0 0.0
      %257 = vmatprep.subr.mxu0 0.0
      %258 = vmatpush1.xpose.msra.mxu0 0.0
      %259 = vmatprep.subr.mxu0 0.0
      %260 = vmatpush1.xpose.msra.mxu0 0.0
      %261 = vmatprep.subr.mxu0 0.0
      %262 = vmatpush1.xpose.msra.mxu0 0.0
      %263 = vmatprep.subr.mxu0 0.0
      %264 = vmatpush1.xpose.msra.mxu0 %v231
      %265 = vmatprep.subr.mxu0 0.0
      %266 = vmatpush2.xpose.msra.mxu0 0.0
      %267 = vmatprep.subr.mxu0 0.0
      %268 = vmatpush2.xpose.msra.mxu0 0.0
      %269 = vmatprep.subr.mxu0 0.0
      %270 = vmatpush2.xpose.msra.mxu0 0.0
      %271 = vmatprep.subr.mxu0 0.0
      %272 = vmatpush2.xpose.msra.mxu0 0.0
      %273 = vmatprep.subr.mxu0 0.0
      %274 = vmatpush2.xpose.msra.mxu0 0.0
      %275 = vmatprep.subr.mxu0 0.0
      %276 = vmatpush2.xpose.msra.mxu0 0.0
      %277 = vmatprep.subr.mxu0 0.0
      %278 = vmatpush2.xpose.msra.mxu0 0.0
      %279 = vmatprep.subr.mxu0 0.0
      %280 = vmatpush2.xpose.msra.mxu0 0.0
      %281 = vmatprep.subr.mxu0 0.0
      %282 = vmatpush2.xpose.msra.mxu0 0.0
      %283 = vmatprep.subr.mxu0 0.0
      %284 = vmatpush2.xpose.msra.mxu0 0.0
      %285 = vmatprep.subr.mxu0 0.0
      %286 = vmatpush2.xpose.msra.mxu0 0.0
      %287 = vmatprep.subr.mxu0 0.0
      %288 = vmatpush2.xpose.msra.mxu0 0.0
      %289 = vmatprep.subr.mxu0 0.0
      %290 = vmatpush2.xpose.msra.mxu0 0.0
      %291 = vmatprep.subr.mxu0 0.0
      %292 = vmatpush2.xpose.msra.mxu0 0.0
      %293 = vmatprep.subr.mxu0 0.0
      %294 = vmatpush2.xpose.msra.mxu0 0.0
      %295 = vmatprep.subr.mxu0 0.0
      %296 = vmatpush2.xpose.msra.mxu0 0.0
      %297 = vmatprep.mubr.f32.mxu0 0.0
      %298 = vmatmul.mubr.f32.gmra.mxu0 %v228
      %v299 = vpop.f32.mrf.mxu0
      %v300 = vadd.f32 0.0, %v299
      %v301 = vpop.f32.mrf.mxu0
      %302 = vdwg.mxu0
      %v303 = vmax.f32 %v300, 0.0
      %v304 = vld [vmem:[%s2] sm:$0xff]
      %v305 = vld [vmem:[%s2 + $0x8] sm:$0xff]
      %v306 = vld [vmem:[%s2 + $0x10] sm:$0xff]
      %v307 = vld [vmem:[%s2 + $0x18] sm:$0xff]
      %vm308 = vcmask 15360
      %v310 = vsel %vm308, %v303, 0
      %v313 = vsel %vm308, %v304, 0
      %v316 = vsel %vm308, %v305, 0
      %v319 = vsel %vm308, %v306, 0
      %v322 = vsel %vm308, %v307, 0
      %324 = vmatprep.subr.mxu0 0.0
      %325 = vmatpush1.xpose.msra.mxu0 0.0
      %326 = vmatprep.subr.mxu0 0.0
      %327 = vmatpush1.xpose.msra.mxu0 0.0
      %328 = vmatprep.subr.mxu0 0.0
      %329 = vmatpush1.xpose.msra.mxu0 0.0
      %330 = vmatprep.subr.mxu0 0.0
      %331 = vmatpush1.xpose.msra.mxu0 0.0
      %332 = vmatprep.subr.mxu0 0.0
      %333 = vmatpush1.xpose.msra.mxu0 0.0
      %334 = vmatprep.subr.mxu0 0.0
      %335 = vmatpush1.xpose.msra.mxu0 0.0
      %336 = vmatprep.subr.mxu0 0.0
      %337 = vmatpush1.xpose.msra.mxu0 0.0
      %338 = vmatprep.subr.mxu0 0.0
      %339 = vmatpush1.xpose.msra.mxu0 0.0
      %340 = vmatprep.subr.mxu0 0.0
      %341 = vmatpush1.xpose.msra.mxu0 0.0
      %342 = vmatprep.subr.mxu0 0.0
      %343 = vmatpush1.xpose.msra.mxu0 0.0
      %344 = vmatprep.subr.mxu0 0.0
      %345 = vmatpush1.xpose.msra.mxu0 0.0
      %346 = vmatprep.subr.mxu0 0.0
      %347 = vmatpush1.xpose.msra.mxu0 0.0
      %348 = vmatprep.subr.mxu0 0.0
      %349 = vmatpush1.xpose.msra.mxu0 %v322
      %350 = vmatprep.subr.mxu0 0.0
      %351 = vmatpush1.xpose.msra.mxu0 %v319
      %352 = vmatprep.subr.mxu0 0.0
      %353 = vmatpush1.xpose.msra.mxu0 %v316
      %354 = vmatprep.subr.mxu0 0.0
      %355 = vmatpush1.xpose.msra.mxu0 %v313
      %356 = vmatprep.subr.mxu0 0.0
      %357 = vmatpush2.xpose.msra.mxu0 0.0
      %358 = vmatprep.subr.mxu0 0.0
      %359 = vmatpush2.xpose.msra.mxu0 0.0
      %360 = vmatprep.subr.mxu0 0.0
      %361 = vmatpush2.xpose.msra.mxu0 0.0
      %362 = vmatprep.subr.mxu0 0.0
      %363 = vmatpush2.xpose.msra.mxu0 0.0
      %364 = vmatprep.subr.mxu0 0.0
      %365 = vmatpush2.xpose.msra.mxu0 0.0
      %366 = vmatprep.subr.mxu0 0.0
      %367 = vmatpush2.xpose.msra.mxu0 0.0
      %368 = vmatprep.subr.mxu0 0.0
      %369 = vmatpush2.xpose.msra.mxu0 0.0
      %370 = vmatprep.subr.mxu0 0.0
      %371 = vmatpush2.xpose.msra.mxu0 0.0
      %372 = vmatprep.subr.mxu0 0.0
      %373 = vmatpush2.xpose.msra.mxu0 0.0
      %374 = vmatprep.subr.mxu0 0.0
      %375 = vmatpush2.xpose.msra.mxu0 0.0
      %376 = vmatprep.subr.mxu0 0.0
      %377 = vmatpush2.xpose.msra.mxu0 0.0
      %378 = vmatprep.subr.mxu0 0.0
      %379 = vmatpush2.xpose.msra.mxu0 0.0
      %380 = vmatprep.subr.mxu0 0.0
      %381 = vmatpush2.xpose.msra.mxu0 0.0
      %382 = vmatprep.subr.mxu0 0.0
      %383 = vmatpush2.xpose.msra.mxu0 0.0
      %384 = vmatprep.subr.mxu0 0.0
      %385 = vmatpush2.xpose.msra.mxu0 0.0
      %386 = vmatprep.subr.mxu0 0.0
      %387 = vmatpush2.xpose.msra.mxu0 0.0
      %388 = vmatprep.mubr.f32.mxu0 0.0
      %389 = vmatmul.mubr.f32.gmra.mxu0 %v310
      %v390 = vpop.f32.mrf.mxu0
      %v391 = vadd.f32 0.0, %v390
      %v392 = vpop.f32.mrf.mxu0
      %393 = vdwg.mxu0
      %v394 = vxor.u32 %v391, 2147483648
      %v395 = vmul.f32 %v394, 1.442695
      %v396 = vpow.pop %v395
      %v397 = vadd.f32 %v396, 1.0
      %v398 = vrcp.pop %v397
      %v399 = vmul.f32 1.0, %v398
      %v400 = vlaneseq
      %v401 = vshrl.u32 %v400, 7
      %v402 = vsub.s32 0, %v401
      %v403 = vrot.slane %v399, %v402
      %405 = vbcast.lane.b32.xlu0 %v403, 256
      %v406 = vpop.permute.xlu0 %405
      %s408 = sor.u32 256, 8
      %409 = vbcast.lane.b32.xlu0 %v403, %s408
      %v410 = vpop.permute.xlu0 %409
      %s412 = sor.u32 256, 16
      %413 = vbcast.lane.b32.xlu0 %v403, %s412
      %v414 = vpop.permute.xlu0 %413
      %s416 = sor.u32 256, 24
      %417 = vbcast.lane.b32.xlu0 %v403, %s416
      %v418 = vpop.permute.xlu0 %417
      %v419 = vmul.f32 %v171, %v406
      %v420 = vmul.f32 %v172, %v406
      %v421 = vmul.f32 %v173, %v410
      %v422 = vmul.f32 %v174, %v410
      %v423 = vmul.f32 %v175, %v414
      %v424 = vmul.f32 %v176, %v414
      %v425 = vmul.f32 %v177, %v418
      %v426 = vmul.f32 %v178, %v418
      %427 = vst [vmem:[%s170] sm:$0xff] %v419
      %428 = vst [vmem:[%s170 + $0x8] sm:$0xff] %v420
      %429 = vst [vmem:[%s170 + $0x10] sm:$0xff] %v421
      %430 = vst [vmem:[%s170 + $0x18] sm:$0xff] %v422
      %431 = vst [vmem:[%s170 + $0x20] sm:$0xff] %v423
      %432 = vst [vmem:[%s170 + $0x28] sm:$0xff] %v424
      %433 = vst [vmem:[%s170 + $0x30] sm:$0xff] %v425
      %434 = vst [vmem:[%s170 + $0x38] sm:$0xff] %v426
      %p435 = scmp.lt.s32.totalorder %s14, 1
      %s436 = scalar_select %p435, %s14, 1
      %s437 = smul.addr %s436, 8
      %s438 = smul.addr %s437, 8
      %s439 = scalar_lea.vmem %s3, %s438
      // Predicated region
      $region33: #{se_layer.1} parent=31 // pred_check
        %p440 = pneg %p100
      $region34: #{se_layer.1} parent=31 // pred_check_branch
        %442 = sbr.rel (%p440) target = $region36
      $region35: #{se_layer.1} parent=31 // pred_region
        _
      $region36: #{se_layer.1} parent=31 // pred_fallthru
        _
    $region32: #{se_layer.1} parent=5 // pred_fallthru
      _
    %p443 = scmp.le.s32.totalorder 2, %s9
    // Predicated region
    $region37: #{se_layer.1} parent=5 // pred_check
      %p444 = pneg %p443
    $region38: #{se_layer.1} parent=5 // pred_check_branch
      %446 = sbr.rel (%p444) target = $region40
    $region39: #{se_layer.1} parent=5 // pred_region
      %s447 = ssub.s32 %s9, 2
      // Predicated region
      $region41: #{se_layer.1} parent=39 // pred_check
        %p448 = pneg %p106
      $region42: #{se_layer.1} parent=39 // pred_check_branch
        %450 = sbr.rel (%p448) target = $region44
      $region43: #{se_layer.1} parent=39 // pred_region
        %p451 = scmp.lt.s32.totalorder %s15, 1
        %s452 = scalar_select %p451, %s15, 1
        %s453 = smul.addr %s452, 8
        %s454 = smul.addr %s453, 8
        %s455 = scalar_lea.vmem %s3, %s454
      $region44: #{se_layer.1} parent=39 // pred_fallthru
        _
    $region40: #{se_layer.1} parent=5 // pred_fallthru
      _
  $region6: #{se_layer.1} parent=0 // loop_footer
    %s13 = sadd.s32 1, %s9
  $region7: #{se_layer.1} parent=0 // loop_footer_branch
    %8 = sbr.rel target = $region3
  $region8: #{se_layer.1} parent=0 // loop_exit
    _

</llo_original>
